<compile_context>
chip_gen: v6e
topology: v6e:2x2x1
jax: 0.10.0
libtpu: 0.0.40
codegen_flags: <defaults>
</compile_context>

<pallas_src>
import numpy as np
import jax
import jax.numpy as jnp
from jax.experimental import pallas as pl
from jax.experimental.pallas import tpu as pltpu


# ----------------------------------------------------------------------------
# Tiling helpers
# ----------------------------------------------------------------------------
def _pick_tile(n_rows, row_bytes, *, max_tile=8192, vmem_block_budget=12 << 20):
    """Largest row-tile that (a) divides n_rows exactly (no pad/slice HBM round
    trip), (b) is a multiple of 8 sublanes (or the full extent), and (c) keeps
    the pipelined (double-buffered) blocks within a VMEM budget that is safe on
    v5e / v6e / v7x.  `row_bytes` must already include the double-buffering
    factor."""
    cap = int(min(max_tile, n_rows, max(8, vmem_block_budget // max(int(row_bytes), 1))))
    for t in range(cap, 0, -1):
        if n_rows % t == 0 and (t % 8 == 0 or t == n_rows):
            return t
    # Fallback (rare, e.g. prime row counts): caller pads to a multiple of 8.
    return max(8, (cap // 8) * 8)


def _maybe_pad_rows(arrays, tile):
    """Pad row-matrices so the tile divides the row count.  With _pick_tile this
    only triggers for pathological row counts."""
    R = arrays[0].shape[0]
    pad = (-R) % tile
    if pad == 0:
        return arrays, R
    # TODO(synk): handle the ragged tail with a masked store / @pl.when instead
    # of this pad + slice HBM round trip.
    return tuple(jnp.pad(a, ((0, pad), (0, 0))) for a in arrays), R + pad


def _vmem_limit(block_bytes):
    """Explicit VMEM limit with headroom; clamped to stay inside v7x's 64 MiB
    physical VMEM (v5e/v6e have 128 MiB, so this is safe everywhere)."""
    return int(min(max(32 << 20, 4 * int(block_bytes)), 48 << 20))


# ----------------------------------------------------------------------------
# Pallas kernels
# ----------------------------------------------------------------------------
def _conv1x1_bias_kernel(x_ref, w_ref, b_ref, o_ref):
    """Per pixel-tile: rows @ W + b (1x1 conv with folded BN)."""
    acc = jnp.dot(x_ref[...], w_ref[...], preferred_element_type=jnp.float32)
    o_ref[...] = (acc + b_ref[...]).astype(o_ref.dtype)


def _attention_gate_kernel(g1_ref, x_ref, wx_ref, bx_ref, wp_ref, bp_ref, o_ref):
    """Per pixel-tile (g1 already holds the upsampled g-branch conv output):
        x1  = x_rows @ Wx + bx
        h   = relu(g1 + x1)
        psi = sigmoid(sum(h * wp_row, -1) + bp)
        out = x_rows * psi
    """
    x_rows = x_ref[...]
    x1 = jnp.dot(x_rows, wx_ref[...], preferred_element_type=jnp.float32) + bx_ref[...]
    h = jnp.maximum(g1_ref[...].astype(jnp.float32) + x1, 0.0)
    # Single output channel: VPU multiply + cross-lane (XLU) reduce instead of
    # an N=1 MXU matmul that would waste the whole output-lane width.
    logits = jnp.sum(h * wp_ref[...], axis=-1, keepdims=True) + bp_ref[...]
    psi = jax.nn.sigmoid(logits)                                  # (tile, 1)
    # TODO(synk): with tiny F_l (as in this demo) the output store is a masked
    # vst; real U-Net channel counts (>=128) make this lane-dense already.
    o_ref[...] = (x_rows.astype(jnp.float32) * psi).astype(o_ref.dtype)


# ----------------------------------------------------------------------------
# pallas_call wrappers (pixels-major, channels-last rows)
# ----------------------------------------------------------------------------
def conv1x1_rows(x_rows, w, b, *, out_dtype=jnp.float32, max_tile=8192):
    """x_rows: (R, Cin) -> (R, Cout) with folded-BN 1x1 conv weights."""
    R, Cin = x_rows.shape
    Cout = w.shape[1]
    row_bytes = 2 * (Cin * x_rows.dtype.itemsize + Cout * np.dtype(out_dtype).itemsize)
    tile = _pick_tile(R, row_bytes, max_tile=max_tile)
    (x_rows,), Rp = _maybe_pad_rows((x_rows,), tile)

    out = pl.pallas_call(
        _conv1x1_bias_kernel,
        out_shape=jax.ShapeDtypeStruct((Rp, Cout), out_dtype),
        grid_spec=pltpu.PrefetchScalarGridSpec(
            num_scalar_prefetch=0,
            grid=(Rp // tile,),
            in_specs=[
                pl.BlockSpec((tile, Cin), lambda i: (i, 0)),
                pl.BlockSpec((Cin, Cout), lambda i: (0, 0)),
                pl.BlockSpec((1, Cout), lambda i: (0, 0)),
            ],
            out_specs=pl.BlockSpec((tile, Cout), lambda i: (i, 0)),
        ),
        compiler_params=pltpu.CompilerParams(
            dimension_semantics=("parallel",),
            vmem_limit_bytes=_vmem_limit(row_bytes * tile)),
    )(x_rows, w, b)
    return out[:R] if Rp != R else out


def attention_gate_rows(g1_rows, x_rows, wx, bx, wp_row, bp, *,
                        out_dtype=None, max_tile=8192):
    """g1_rows: (R, F_int) upsampled g-branch conv output; x_rows: (R, F_l)."""
    R, F_l = x_rows.shape
    F_int = g1_rows.shape[1]
    out_dtype = out_dtype if out_dtype is not None else x_rows.dtype
    row_bytes = 2 * (F_int * g1_rows.dtype.itemsize
                     + F_l * x_rows.dtype.itemsize
                     + F_l * np.dtype(out_dtype).itemsize)
    tile = _pick_tile(R, row_bytes, max_tile=max_tile)
    (g1_rows, x_rows), Rp = _maybe_pad_rows((g1_rows, x_rows), tile)

    out = pl.pallas_call(
        _attention_gate_kernel,
        out_shape=jax.ShapeDtypeStruct((Rp, F_l), out_dtype),
        grid_spec=pltpu.PrefetchScalarGridSpec(
            num_scalar_prefetch=0,
            grid=(Rp // tile,),
            in_specs=[
                pl.BlockSpec((tile, F_int), lambda i: (i, 0)),   # g1 pixels
                pl.BlockSpec((tile, F_l), lambda i: (i, 0)),     # x pixels
                pl.BlockSpec((F_l, F_int), lambda i: (0, 0)),    # W_x (folded BN)
                pl.BlockSpec((1, F_int), lambda i: (0, 0)),      # b_x
                pl.BlockSpec((1, F_int), lambda i: (0, 0)),      # w_psi row
                pl.BlockSpec((1, 1), lambda i: (0, 0)),          # b_psi
            ],
            out_specs=pl.BlockSpec((tile, F_l), lambda i: (i, 0)),
        ),
        compiler_params=pltpu.CompilerParams(
            dimension_semantics=("parallel",),
            vmem_limit_bytes=_vmem_limit(row_bytes * tile)),
    )(g1_rows, x_rows, wx, bx, wp_row, bp)
    return out[:R] if Rp != R else out


# ----------------------------------------------------------------------------
# Bilinear (align_corners=True) interpolation matrices -- matches
# F.interpolate(..., mode='bilinear', align_corners=True)
# ----------------------------------------------------------------------------
def _align_corners_matrix(dst, src):
    A = np.zeros((dst, src), dtype=np.float32)
    for i in range(dst):
        s = 0.0 if dst == 1 else i * (src - 1) / (dst - 1)
        i0 = int(np.floor(s))
        i1 = min(i0 + 1, src - 1)
        f = s - i0
        A[i, i0] += 1.0 - f
        A[i, i1] += f
    return A


# ----------------------------------------------------------------------------
# Forward passes
# ----------------------------------------------------------------------------
def attention_gate_forward_nhwc(g, x, params, *, compute_dtype=None):
    """Channels-last forward: g (N, Hg, Wg, F_g), x (N, H, W, F_l) -> (N, H, W, F_l).
    Production path (no layout transposes)."""
    wg, bg, wx, bx, wp, bp = params
    N, Hg, Wg, F_g = g.shape
    _, H, W, F_l = x.shape
    F_int = wg.shape[1]
    cdt = compute_dtype if compute_dtype is not None else x.dtype

    # (1) g-branch 1x1 conv (+folded BN) at the COARSE resolution.  Exact:
    #     1x1 conv commutes with align_corners bilinear resize (interp weights
    #     sum to 1), cutting g-branch FLOPs by (H*W)/(Hg*Wg) and the full-res
    #     g traffic from F_g to F_int channels.  Output kept in compute dtype
    #     so bf16 mode halves every downstream intermediate.
    g_rows = g.reshape(N * Hg * Wg, F_g).astype(cdt)
    g1_coarse = conv1x1_rows(g_rows, wg.astype(cdt), bg,
                             out_dtype=cdt).reshape(N, Hg, Wg, F_int)

    # (2) Separable align_corners bilinear upsample (XLA glue, channels-last so
    #     no NCHW<->NHWC transpose pass is introduced).  W-interp first so the
    #     only extra intermediate stays at coarse-H resolution; intermediates
    #     carried in the compute dtype.
    Aw = jnp.asarray(_align_corners_matrix(W, Wg))
    Ah = jnp.asarray(_align_corners_matrix(H, Hg))
    g1_wide = jnp.einsum('Ww,nhwc->nhWc', Aw, g1_coarse).astype(cdt)   # (N,Hg,W,F_int)
    g1 = jnp.einsum('Hh,nhwc->nHwc', Ah, g1_wide).astype(cdt)          # (N,H,W,F_int)

    # (3) fused x-branch conv + relu + psi + gating in one Pallas pass.
    out_rows = attention_gate_rows(
        g1.reshape(N * H * W, F_int),
        x.reshape(N * H * W, F_l).astype(cdt),
        wx.astype(cdt),
        bx.astype(jnp.float32),
        wp.reshape(1, F_int).astype(jnp.float32),
        bp.astype(jnp.float32),
        out_dtype=x.dtype)
    return out_rows.reshape(N, H, W, F_l)


def attention_gate_forward(g, x, params, *, compute_dtype=None):
    """NCHW adapter matching the PyTorch module interface: g (N, F_g, Hg, Wg),
    x (N, F_l, H, W).  The transposes here are only for spec compatibility;
    in an NHWC network call attention_gate_forward_nhwc directly."""
    g_nhwc = jnp.transpose(g, (0, 2, 3, 1))
    x_nhwc = jnp.transpose(x, (0, 2, 3, 1))
    out = attention_gate_forward_nhwc(g_nhwc, x_nhwc, params,
                                      compute_dtype=compute_dtype)
    return jnp.transpose(out, (0, 3, 1, 2))


# ----------------------------------------------------------------------------
# Deterministic parameter init: Conv2d(1x1) + BatchNorm2d folded into (W, b)
# ----------------------------------------------------------------------------
def _make_conv_bn(key, cin, cout, eps=1e-5):
    kw, kb, kg, kbeta, kmean, kvar = jax.random.split(key, 6)
    w = 0.1 * jax.random.normal(kw, (cin, cout), jnp.float32)      # conv weight (Cin, Cout)
    b = 0.1 * jax.random.normal(kb, (cout,), jnp.float32)          # conv bias
    gamma = 1.0 + 0.1 * jax.random.normal(kg, (cout,), jnp.float32)
    beta = 0.1 * jax.random.normal(kbeta, (cout,), jnp.float32)
    mean = 0.1 * jax.random.normal(kmean, (cout,), jnp.float32)
    var = jnp.abs(1.0 + 0.1 * jax.random.normal(kvar, (cout,), jnp.float32))
    scale = gamma / jnp.sqrt(var + eps)
    w_eff = w * scale[None, :]
    b_eff = ((b - mean) * scale + beta).reshape(1, cout)
    return w_eff, b_eff


def init_attention_gate_params(key, F_g, F_l, F_int):
    k1, k2, k3 = jax.random.split(key, 3)
    wg, bg = _make_conv_bn(k1, F_g, F_int)
    wx, bx = _make_conv_bn(k2, F_l, F_int)
    wp, bp = _make_conv_bn(k3, F_int, 1)
    return (wg, bg, wx, bx, wp, bp)


# ----------------------------------------------------------------------------
# Pure-JAX reference (follows the PyTorch op order exactly)
# ----------------------------------------------------------------------------
def attention_gate_reference(g, x, params):
    wg, bg, wx, bx, wp, bp = params
    N, F_g, Hg, Wg = g.shape
    _, F_l, H, W = x.shape
    Ah = jnp.asarray(_align_corners_matrix(H, Hg))
    Aw = jnp.asarray(_align_corners_matrix(W, Wg))
    g_up = jnp.einsum('Hh,nchw,Ww->ncHW', Ah, g, Aw)
    g1 = jnp.einsum('nchw,cd->ndhw', g_up, wg) + bg.reshape(1, -1, 1, 1)
    x1 = jnp.einsum('nchw,cd->ndhw', x, wx) + bx.reshape(1, -1, 1, 1)
    h = jnp.maximum(g1 + x1, 0.0)
    psi = jax.nn.sigmoid(jnp.einsum('ndhw,de->nehw', h, wp) + bp.reshape(1, -1, 1, 1))
    return x * psi


if __name__ == "__main__":
    key = jax.random.PRNGKey(0)
    k_g, k_x, k_p = jax.random.split(key, 3)

    N, F_g, F_l, F_int = 2, 4, 4, 8
    H = W = 16
    Hg = Wg = 8   # gating signal comes from a coarser decoder level

    g = jax.random.normal(k_g, (N, F_g, Hg, Wg), jnp.float32)
    x = jax.random.normal(k_x, (N, F_l, H, W), jnp.float32)
    params = init_attention_gate_params(k_p, F_g, F_l, F_int)

    ref = jax.block_until_ready(attention_gate_reference(g, x, params))

    # f32 compute path (matches the reference tightly).
    out = jax.block_until_ready(attention_gate_forward(g, x, params))
    assert out.shape == (N, F_l, H, W)
    np.testing.assert_allclose(np.asarray(out), np.asarray(ref), rtol=1e-4, atol=1e-4)

    # bf16 activations/weights/intermediates (roughly halves HBM traffic on this
    # memory-bound kernel); MXU accumulation stays f32, output stays in x's dtype.
    out_bf16 = jax.block_until_ready(
        attention_gate_forward(g, x, params, compute_dtype=jnp.bfloat16))
    np.testing.assert_allclose(np.asarray(out_bf16), np.asarray(ref), rtol=5e-2, atol=5e-2)

    print("KERNEL_OK")
</pallas_src>

<mosaic_0001>
module attributes {stable_mosaic.version = 11 : i64} {
  func.func @_conv1x1_bias_kernel(%arg0: i32, %arg1: memref<128x4xf32, #tpu.memory_space<vmem>>, %arg2: memref<4x8xf32, #tpu.memory_space<vmem>>, %arg3: memref<1x8xf32, #tpu.memory_space<vmem>>, %arg4: memref<128x8xf32, #tpu.memory_space<vmem>>) attributes {dimension_semantics = [#tpu.dimension_semantics<parallel>], iteration_bounds = array<i64: 1>, scalar_prefetch = 0 : i64, scratch_operands = 0 : i64, tpu.core_type = #tpu.core_type<tc>, window_params = [{transform_indices = @transform_0, window_bounds = array<i64: 128, 4>}, {pipeline_mode = #tpu.pipeline_mode<synchronous>, transform_indices = @transform_1, window_bounds = array<i64: 4, 8>}, {pipeline_mode = #tpu.pipeline_mode<synchronous>, transform_indices = @transform_2, window_bounds = array<i64: 1, 8>}, {transform_indices = @transform_3, window_bounds = array<i64: 128, 8>}]} {
    %c0 = arith.constant 0 : index
    %c0_0 = arith.constant 0 : index
    %0 = vector.load %arg1[%c0, %c0_0] : memref<128x4xf32, #tpu.memory_space<vmem>>, vector<128x4xf32>
    %c0_1 = arith.constant 0 : index
    %c0_2 = arith.constant 0 : index
    %1 = vector.load %arg2[%c0_1, %c0_2] : memref<4x8xf32, #tpu.memory_space<vmem>>, vector<4x8xf32>
    %cst = arith.constant dense<0.000000e+00> : vector<128x8xf32>
    %2 = tpu.matmul %0, %1, %cst {dimension_numbers = #tpu.dot_dimension_numbers<[1], [0], [0], [1], [0, 0, 1, 1], [], []>} : vector<128x4xf32>, vector<4x8xf32>, vector<128x8xf32> -> vector<128x8xf32>
    %c0_3 = arith.constant 0 : index
    %c0_4 = arith.constant 0 : index
    %3 = vector.load %arg3[%c0_3, %c0_4] : memref<1x8xf32, #tpu.memory_space<vmem>>, vector<1x8xf32>
    %4 = vector.broadcast %3 : vector<1x8xf32> to vector<128x8xf32>
    %5 = arith.addf %2, %4 : vector<128x8xf32>
    %c0_5 = arith.constant 0 : index
    %c0_6 = arith.constant 0 : index
    %6 = vector.load %arg4[%c0_5, %c0_6] : memref<128x8xf32, #tpu.memory_space<vmem>>, vector<128x8xf32>
    tpu.vector_store %arg4[%c0_5, %c0_6], %5 {strides = array<i32>} : memref<128x8xf32, #tpu.memory_space<vmem>>, vector<128x8xf32>,
    return
  }
  func.func @transform_0(%arg0: i32) -> (i32, i32) {
    %c0_i32 = arith.constant 0 : i32
    %c0_i32_0 = arith.constant 0 : i32
    return %arg0, %c0_i32 : i32, i32
  }
  func.func @transform_1(%arg0: i32) -> (i32, i32) {
    %c0_i32 = arith.constant 0 : i32
    %c0_i32_0 = arith.constant 0 : i32
    %c0_i32_1 = arith.constant 0 : i32
    return %c0_i32, %c0_i32_0 : i32, i32
  }
  func.func @transform_2(%arg0: i32) -> (i32, i32) {
    %c0_i32 = arith.constant 0 : i32
    %c0_i32_0 = arith.constant 0 : i32
    %c0_i32_1 = arith.constant 0 : i32
    return %c0_i32, %c0_i32_0 : i32, i32
  }
  func.func @transform_3(%arg0: i32) -> (i32, i32) {
    %c0_i32 = arith.constant 0 : i32
    %c0_i32_0 = arith.constant 0 : i32
    return %arg0, %c0_i32 : i32, i32
  }
}

</mosaic_0001>

<llo_original>
// kernel: tpu_custom_call.1
$region0: #{tpu_custom_call.1}
  #allocation0 [shape = 'u32[]', space=smem, size = 0x4, offset = 0x4, fixed_abs, tag = 'smem constant byte address 0x4 - core index']
  #allocation1 [shape = 'u32[144,128]{1,0:T(1,128)}', space=vmem, size = 0x12000, scoped, tag = 'internal scratch']
  %s0 = inlined_call_operand.vmem [shape: f32[128,4], index: 0, kind: input, shape index: {}]
  %s1 = inlined_call_operand.vmem [shape: f32[4,8], index: 1, kind: input, shape index: {}]
  %s2 = inlined_call_operand.vmem [shape: f32[1,8], index: 2, kind: input, shape index: {}]
  %s3 = inlined_call_operand.vmem [shape: f32[128,8], index: 3, kind: output, shape index: {}]
  %s4 = sld [smem:[#allocation0]]
  $region22: #{tpu_custom_call.1} parent=0
    _
  %s6 = ssub.s32 1, %s4
  %s7 = scalar_select 0, %s6, %s4
  // Predicated region
  $region2: #{tpu_custom_call.1} parent=0 // pred_check
    _
  $region3: #{tpu_custom_call.1} parent=0 // pred_check_branch
    %9 = sbr.rel (0) target = $region5
  $region4: #{tpu_custom_call.1} parent=0 // pred_region
    _
  $region5: #{tpu_custom_call.1} parent=0 // pred_fallthru
    _
  // Predicated region
  $region6: #{tpu_custom_call.1} parent=0 // pred_check
    _
  $region7: #{tpu_custom_call.1} parent=0 // pred_check_branch
    %11 = sbr.rel (0) target = $region9
  $region8: #{tpu_custom_call.1} parent=0 // pred_region
    _
  $region9: #{tpu_custom_call.1} parent=0 // pred_fallthru
    _
  // Predicated region
  $region10: #{tpu_custom_call.1} parent=0 // pred_check
    _
  $region11: #{tpu_custom_call.1} parent=0 // pred_check_branch
    %13 = sbr.rel (0) target = $region13
  $region12: #{tpu_custom_call.1} parent=0 // pred_region
    _
  $region13: #{tpu_custom_call.1} parent=0 // pred_fallthru
    _
  %v14 = vld [vmem:[%s0] sm:$0xff]
  %v15 = vld [vmem:[%s0 + $0x8] sm:$0xff]
  %v16 = vld [vmem:[%s0 + $0x10] sm:$0xff]
  %v17 = vld [vmem:[%s0 + $0x18] sm:$0xff]
  %v18 = vld [vmem:[%s0 + $0x20] sm:$0xff]
  %v19 = vld [vmem:[%s0 + $0x28] sm:$0xff]
  %v20 = vld [vmem:[%s0 + $0x30] sm:$0xff]
  %v21 = vld [vmem:[%s0 + $0x38] sm:$0xff]
  %v22 = vld [vmem:[%s0 + $0x40] sm:$0xff]
  %v23 = vld [vmem:[%s0 + $0x48] sm:$0xff]
  %v24 = vld [vmem:[%s0 + $0x50] sm:$0xff]
  %v25 = vld [vmem:[%s0 + $0x58] sm:$0xff]
  %v26 = vld [vmem:[%s0 + $0x60] sm:$0xff]
  %v27 = vld [vmem:[%s0 + $0x68] sm:$0xff]
  %v28 = vld [vmem:[%s0 + $0x70] sm:$0xff]
  %v29 = vld [vmem:[%s0 + $0x78] sm:$0xff]
  %v30 = vld [vmem:[%s1] sm:$0xf]
  %v31 = vld [vmem:[%s2] sm:$0x1]
  %v33 = vlaneseq
  %v34 = vshrl.u32 %v33, 7
  %v35 = vsub.s32 0, %v34
  %v36 = vrot.slane %v31, %v35
  %vm38 = vcmask 31744
  %v40 = vsel %vm38, %v14, 0
  %v43 = vsel %vm38, %v15, 0
  %v46 = vsel %vm38, %v16, 0
  %v49 = vsel %vm38, %v17, 0
  %v52 = vsel %vm38, %v18, 0
  %v55 = vsel %vm38, %v19, 0
  %v58 = vsel %vm38, %v20, 0
  %v61 = vsel %vm38, %v21, 0
  %v64 = vsel %vm38, %v22, 0
  %v67 = vsel %vm38, %v23, 0
  %v70 = vsel %vm38, %v24, 0
  %v73 = vsel %vm38, %v25, 0
  %v76 = vsel %vm38, %v26, 0
  %v79 = vsel %vm38, %v27, 0
  %v82 = vsel %vm38, %v28, 0
  %v85 = vsel %vm38, %v29, 0
  %vm87 = vcmask 1043456
  %v89 = vsel %vm87, %v30, 0
  %91 = vmatprep.subr.mxu0 0.0
  %92 = vmatpush1.msra.mxu0 0.0
  %93 = vmatprep.subr.mxu0 0.0
  %94 = vmatpush1.msra.mxu0 0.0
  %95 = vmatprep.subr.mxu0 0.0
  %96 = vmatpush1.msra.mxu0 0.0
  %97 = vmatprep.subr.mxu0 0.0
  %98 = vmatpush1.msra.mxu0 0.0
  %99 = vmatprep.subr.mxu0 0.0
  %100 = vmatpush1.msra.mxu0 0.0
  %101 = vmatprep.subr.mxu0 0.0
  %102 = vmatpush1.msra.mxu0 0.0
  %103 = vmatprep.subr.mxu0 0.0
  %104 = vmatpush1.msra.mxu0 0.0
  %105 = vmatprep.subr.mxu0 0.0
  %106 = vmatpush1.msra.mxu0 0.0
  %107 = vmatprep.subr.mxu0 0.0
  %108 = vmatpush1.msra.mxu0 0.0
  %109 = vmatprep.subr.mxu0 0.0
  %110 = vmatpush1.msra.mxu0 0.0
  %111 = vmatprep.subr.mxu0 0.0
  %112 = vmatpush1.msra.mxu0 0.0
  %113 = vmatprep.subr.mxu0 0.0
  %114 = vmatpush1.msra.mxu0 0.0
  %115 = vmatprep.subr.mxu0 0.0
  %116 = vmatpush1.msra.mxu0 0.0
  %117 = vmatprep.subr.mxu0 0.0
  %118 = vmatpush1.msra.mxu0 0.0
  %119 = vmatprep.subr.mxu0 0.0
  %120 = vmatpush1.msra.mxu0 0.0
  %121 = vmatprep.subr.mxu0 0.0
  %122 = vmatpush1.msra.mxu0 %v89
  %123 = vmatprep.subr.mxu0 0.0
  %124 = vmatpush2.msra.mxu0 0.0
  %125 = vmatprep.subr.mxu0 0.0
  %126 = vmatpush2.msra.mxu0 0.0
  %127 = vmatprep.subr.mxu0 0.0
  %128 = vmatpush2.msra.mxu0 0.0
  %129 = vmatprep.subr.mxu0 0.0
  %130 = vmatpush2.msra.mxu0 0.0
  %131 = vmatprep.subr.mxu0 0.0
  %132 = vmatpush2.msra.mxu0 0.0
  %133 = vmatprep.subr.mxu0 0.0
  %134 = vmatpush2.msra.mxu0 0.0
  %135 = vmatprep.subr.mxu0 0.0
  %136 = vmatpush2.msra.mxu0 0.0
  %137 = vmatprep.subr.mxu0 0.0
  %138 = vmatpush2.msra.mxu0 0.0
  %139 = vmatprep.subr.mxu0 0.0
  %140 = vmatpush2.msra.mxu0 0.0
  %141 = vmatprep.subr.mxu0 0.0
  %142 = vmatpush2.msra.mxu0 0.0
  %143 = vmatprep.subr.mxu0 0.0
  %144 = vmatpush2.msra.mxu0 0.0
  %145 = vmatprep.subr.mxu0 0.0
  %146 = vmatpush2.msra.mxu0 0.0
  %147 = vmatprep.subr.mxu0 0.0
  %148 = vmatpush2.msra.mxu0 0.0
  %149 = vmatprep.subr.mxu0 0.0
  %150 = vmatpush2.msra.mxu0 0.0
  %151 = vmatprep.subr.mxu0 0.0
  %152 = vmatpush2.msra.mxu0 0.0
  %153 = vmatprep.subr.mxu0 0.0
  %154 = vmatpush2.msra.mxu0 0.0
  %155 = vmatprep.mubr.f32.mxu0 0.0
  %156 = vmatmul.mubr.f32.gmra.mxu0 %v40
  %v157 = vpop.f32.mrf.mxu0
  %v158 = vadd.f32 %v36, %v157
  %v159 = vpop.f32.mrf.mxu0
  %160 = vmatprep.mubr.f32.mxu0 0.0
  %161 = vmatmul.mubr.f32.gmra.mxu0 %v43
  %v162 = vpop.f32.mrf.mxu0
  %v163 = vadd.f32 %v36, %v162
  %v164 = vpop.f32.mrf.mxu0
  %165 = vmatprep.mubr.f32.mxu0 0.0
  %166 = vmatmul.mubr.f32.gmra.mxu0 %v46
  %v167 = vpop.f32.mrf.mxu0
  %v168 = vadd.f32 %v36, %v167
  %v169 = vpop.f32.mrf.mxu0
  %170 = vmatprep.mubr.f32.mxu0 0.0
  %171 = vmatmul.mubr.f32.gmra.mxu0 %v49
  %v172 = vpop.f32.mrf.mxu0
  %v173 = vadd.f32 %v36, %v172
  %v174 = vpop.f32.mrf.mxu0
  %175 = vmatprep.mubr.f32.mxu0 0.0
  %176 = vmatmul.mubr.f32.gmra.mxu0 %v52
  %v177 = vpop.f32.mrf.mxu0
  %v178 = vadd.f32 %v36, %v177
  %v179 = vpop.f32.mrf.mxu0
  %180 = vmatprep.mubr.f32.mxu0 0.0
  %181 = vmatmul.mubr.f32.gmra.mxu0 %v55
  %v182 = vpop.f32.mrf.mxu0
  %v183 = vadd.f32 %v36, %v182
  %v184 = vpop.f32.mrf.mxu0
  %185 = vmatprep.mubr.f32.mxu0 0.0
  %186 = vmatmul.mubr.f32.gmra.mxu0 %v58
  %v187 = vpop.f32.mrf.mxu0
  %v188 = vadd.f32 %v36, %v187
  %v189 = vpop.f32.mrf.mxu0
  %190 = vmatprep.mubr.f32.mxu0 0.0
  %191 = vmatmul.mubr.f32.gmra.mxu0 %v61
  %v192 = vpop.f32.mrf.mxu0
  %v193 = vadd.f32 %v36, %v192
  %v194 = vpop.f32.mrf.mxu0
  %195 = vmatprep.mubr.f32.mxu0 0.0
  %196 = vmatmul.mubr.f32.gmra.mxu0 %v64
  %v197 = vpop.f32.mrf.mxu0
  %v198 = vadd.f32 %v36, %v197
  %v199 = vpop.f32.mrf.mxu0
  %200 = vmatprep.mubr.f32.mxu0 0.0
  %201 = vmatmul.mubr.f32.gmra.mxu0 %v67
  %v202 = vpop.f32.mrf.mxu0
  %v203 = vadd.f32 %v36, %v202
  %v204 = vpop.f32.mrf.mxu0
  %205 = vmatprep.mubr.f32.mxu0 0.0
  %206 = vmatmul.mubr.f32.gmra.mxu0 %v70
  %v207 = vpop.f32.mrf.mxu0
  %v208 = vadd.f32 %v36, %v207
  %v209 = vpop.f32.mrf.mxu0
  %210 = vmatprep.mubr.f32.mxu0 0.0
  %211 = vmatmul.mubr.f32.gmra.mxu0 %v73
  %v212 = vpop.f32.mrf.mxu0
  %v213 = vadd.f32 %v36, %v212
  %v214 = vpop.f32.mrf.mxu0
  %215 = vmatprep.mubr.f32.mxu0 0.0
  %216 = vmatmul.mubr.f32.gmra.mxu0 %v76
  %v217 = vpop.f32.mrf.mxu0
  %v218 = vadd.f32 %v36, %v217
  %v219 = vpop.f32.mrf.mxu0
  %220 = vmatprep.mubr.f32.mxu0 0.0
  %221 = vmatmul.mubr.f32.gmra.mxu0 %v79
  %v222 = vpop.f32.mrf.mxu0
  %v223 = vadd.f32 %v36, %v222
  %v224 = vpop.f32.mrf.mxu0
  %225 = vmatprep.mubr.f32.mxu0 0.0
  %226 = vmatmul.mubr.f32.gmra.mxu0 %v82
  %v227 = vpop.f32.mrf.mxu0
  %v228 = vadd.f32 %v36, %v227
  %v229 = vpop.f32.mrf.mxu0
  %230 = vmatprep.mubr.f32.mxu0 0.0
  %231 = vmatmul.mubr.f32.gmra.mxu0 %v85
  %v232 = vpop.f32.mrf.mxu0
  %v233 = vadd.f32 %v36, %v232
  %v234 = vpop.f32.mrf.mxu0
  %235 = vdwg.mxu0
  %vm236 = vcmask 64512
  %237 = vst.msk [vmem:[%s3] sm:$0xff] %vm236, %v158
  %238 = vst.msk [vmem:[%s3 + $0x8] sm:$0xff] %vm236, %v163
  %239 = vst.msk [vmem:[%s3 + $0x10] sm:$0xff] %vm236, %v168
  %240 = vst.msk [vmem:[%s3 + $0x18] sm:$0xff] %vm236, %v173
  %241 = vst.msk [vmem:[%s3 + $0x20] sm:$0xff] %vm236, %v178
  %242 = vst.msk [vmem:[%s3 + $0x28] sm:$0xff] %vm236, %v183
  %243 = vst.msk [vmem:[%s3 + $0x30] sm:$0xff] %vm236, %v188
  %244 = vst.msk [vmem:[%s3 + $0x38] sm:$0xff] %vm236, %v193
  %245 = vst.msk [vmem:[%s3 + $0x40] sm:$0xff] %vm236, %v198
  %246 = vst.msk [vmem:[%s3 + $0x48] sm:$0xff] %vm236, %v203
  %247 = vst.msk [vmem:[%s3 + $0x50] sm:$0xff] %vm236, %v208
  %248 = vst.msk [vmem:[%s3 + $0x58] sm:$0xff] %vm236, %v213
  %249 = vst.msk [vmem:[%s3 + $0x60] sm:$0xff] %vm236, %v218
  %250 = vst.msk [vmem:[%s3 + $0x68] sm:$0xff] %vm236, %v223
  %251 = vst.msk [vmem:[%s3 + $0x70] sm:$0xff] %vm236, %v228
  %252 = vst.msk [vmem:[%s3 + $0x78] sm:$0xff] %vm236, %v233
  // Predicated region
  $region14: #{tpu_custom_call.1} parent=0 // pred_check
    _
  $region15: #{tpu_custom_call.1} parent=0 // pred_check_branch
    %254 = sbr.rel (0) target = $region17
  $region16: #{tpu_custom_call.1} parent=0 // pred_region
    _
  $region17: #{tpu_custom_call.1} parent=0 // pred_fallthru
    _
  // Predicated region
  $region18: #{tpu_custom_call.1} parent=0 // pred_check
    _
  $region19: #{tpu_custom_call.1} parent=0 // pred_check_branch
    %256 = sbr.rel (0) target = $region21
  $region20: #{tpu_custom_call.1} parent=0 // pred_region
    _
  $region21: #{tpu_custom_call.1} parent=0 // pred_fallthru
    _

</llo_original>
